<compile_context>
chip_gen: v6e
topology: v6e:2x2x1
jax: 0.10.0
libtpu: 0.0.40
codegen_flags: <defaults>
</compile_context>

<pallas_src>
import jax
import jax.numpy as jnp
from jax.experimental import pallas as pl
from jax.experimental.pallas import tpu as pltpu


def _banded_conv_weights(w, W):
    """w: (C_out, C_in, 3, 3) in PyTorch OIHW layout.

    Returns a (3*W*C_in, W*C_out) block-Toeplitz matrix with the dy taps folded
    into K (row blocks ordered dy=0, dy=1, dy=2).  The dx taps and the zero-padding
    at the W boundary are encoded inside each band, so a 3x3 SAME conv becomes a
    single matmul over flattened (W*C) lanes per set of dy-shifted rows.
    """
    c_out, c_in = w.shape[0], w.shape[1]
    wt = jnp.transpose(w, (2, 3, 1, 0))                      # (dy, dx, ci, co)
    wi = jnp.arange(W)[None, :, None]
    wo = jnp.arange(W)[None, None, :]
    dx = jnp.arange(3)[:, None, None]
    sel = (wi == wo + dx - 1).astype(wt.dtype)               # (3, W, W) 0/1 selector
    band = jnp.einsum('xio,yxck->yicok', sel, wt)            # (dy, Wi, ci, Wo, co)
    return band.reshape(3 * W * c_in, W * c_out)


def double_conv_kernel(x_ref, w1_ref, b1_ref, w2_ref, b2_ref, o_ref,
                       xh_ref, mid_ref):
    # x_ref  : (Nb, H, W*Cin)      f32 unpadded input block, (W,Cin) in lanes
    # w1_ref : (3*W*Cin, W*Cout)   bf16 banded conv1 weights, dy folded into K
    # b1_ref : (1, W*Cout)         f32, conv1 bias tiled along W
    # w2_ref : (3*W*Cout, W*Cout)  bf16 banded conv2 weights
    # b2_ref : (1, W*Cout)         f32
    # o_ref  : (Nb, H, W*Cout)     lane-dense output
    # xh_ref : (Nb, H+2, W*Cin)    f32 scratch: H-padded input (rows 0 / H+1 = halo)
    # mid_ref: (Nb, H+2, W*Cout)   f32 scratch: H-padded ReLU(conv1)
    Nb, H, WCi = x_ref.shape
    WCo = o_ref.shape[2]

    # H zero-padding happens here (no wrapper jnp.pad / HBM round-trip).  Halo rows
    # are re-zeroed every step (2 rows per image, negligible) so results stay correct
    # when the batch grid axis is sharded across TensorCores on multi-core chips.
    zi = jnp.zeros((1, WCi), jnp.float32)
    for n in range(Nb):
        xh_ref[n, 0:1, :] = zi
        xh_ref[n, H + 1:H + 2, :] = zi
        xh_ref[n, 1:H + 1, :] = x_ref[n]

    def banded_conv(src_ref, w_ref, b_ref):
        # Build the (Nb*H, 3*WC) LHS: per image, lane-concat the 3 dy-shifted row
        # windows (dx taps + W boundary live in the banded K dim), then sublane-concat
        # the images so the whole batch is one MXU matmul (M = Nb*H), cast once.
        parts = []
        for n in range(Nb):
            parts.append(jnp.concatenate(
                [src_ref[n, dy:dy + H, :] for dy in range(3)], axis=-1))
        lhs = jnp.concatenate(parts, axis=0).astype(jnp.bfloat16)
        acc = jnp.dot(lhs, w_ref[...], preferred_element_type=jnp.float32)
        return jnp.maximum(acc + b_ref[...], 0.0)            # f32 epilogue

    # ---- conv1 + ReLU ----
    mid = banded_conv(xh_ref, w1_ref, b1_ref)                # (Nb*H, WCo)
    # TODO(synk): Dropout2d(p=0.2) is the identity in eval/inference mode; the
    # training-mode whole-channel stochastic dropout (pltpu.prng_* masking of `mid`)
    # is not implemented here.

    zo = jnp.zeros((1, WCo), jnp.float32)
    for n in range(Nb):
        mid_ref[n, 0:1, :] = zo
        mid_ref[n, H + 1:H + 2, :] = zo
        mid_ref[n, 1:H + 1, :] = mid[n * H:(n + 1) * H, :]

    # ---- conv2 + ReLU ----
    out = banded_conv(mid_ref, w2_ref, b2_ref)               # (Nb*H, WCo)
    o_ref[...] = out.reshape(Nb, H, WCo).astype(o_ref.dtype)


def double_conv(x_nchw, w1, b1, w2, b2):
    """x_nchw: (N, Cin, H, W); w1: (Cout, Cin, 3, 3); b1: (Cout,);
    w2: (Cout, Cout, 3, 3); b2: (Cout,).  Returns (N, Cout, H, W) float32."""
    N, Cin, H, W = x_nchw.shape
    Cout = w1.shape[0]

    # NOTE: callers that can supply NHWC (and consume (N, H, W*Cout)) directly would
    # save these HBM-side transposes around the kernel.
    x = jnp.transpose(x_nchw, (0, 2, 3, 1))                  # NHWC, no H padding here
    x = x.reshape(N, H, W * Cin).astype(jnp.float32)

    # Fold the batch into the matmul M dimension: Nb images per grid step (M = Nb*H).
    nb = int(min(N, 16, max(1, 256 // max(H, 1))))
    n_pad = (-N) % nb
    if n_pad:
        x = jnp.concatenate(
            [x, jnp.zeros((n_pad, H, W * Cin), x.dtype)], axis=0)
    n_total = N + n_pad

    bw1 = _banded_conv_weights(w1, W).astype(jnp.bfloat16)   # (3*W*Cin,  W*Cout)
    bw2 = _banded_conv_weights(w2, W).astype(jnp.bfloat16)   # (3*W*Cout, W*Cout)
    b1t = jnp.tile(b1, W).reshape(1, W * Cout).astype(jnp.float32)
    b2t = jnp.tile(b2, W).reshape(1, W * Cout).astype(jnp.float32)

    # TODO(synk): for large images (e.g. 256x256 UNet tiles) add an H row-slab grid
    # axis with a 2-row halo and tile the O(W^2) band per 128-lane output W-block
    # (each output W-tile only needs its +-1 input W-tiles) so blocks fit v7x's
    # 64 MiB VMEM and both TensorCores get >=4 steps even at batch 1.
    out_flat = pl.pallas_call(
        double_conv_kernel,
        out_shape=jax.ShapeDtypeStruct((n_total, H, W * Cout), jnp.float32),
        grid_spec=pltpu.PrefetchScalarGridSpec(
            num_scalar_prefetch=0,
            grid=(n_total // nb,),
            in_specs=[
                pl.BlockSpec((nb, H, W * Cin), lambda i: (i, 0, 0)),
                pl.BlockSpec((3 * W * Cin, W * Cout), lambda i: (0, 0)),
                pl.BlockSpec((1, W * Cout), lambda i: (0, 0)),
                pl.BlockSpec((3 * W * Cout, W * Cout), lambda i: (0, 0)),
                pl.BlockSpec((1, W * Cout), lambda i: (0, 0)),
            ],
            out_specs=pl.BlockSpec((nb, H, W * Cout), lambda i: (i, 0, 0)),
            scratch_shapes=[
                pltpu.VMEM((nb, H + 2, W * Cin), jnp.float32),
                pltpu.VMEM((nb, H + 2, W * Cout), jnp.float32),
            ]),
        compiler_params=pltpu.CompilerParams(
            dimension_semantics=("parallel",)),
    )(x, bw1, b1t, bw2, b2t)

    out = out_flat[:N].reshape(N, H, W, Cout)
    return jnp.transpose(out, (0, 3, 1, 2))                  # back to NCHW


def ref_double_conv(x, w1, b1, w2, b2, compute_dtype=jnp.float32):
    """Pure-JAX reference in NCHW / OIHW (PyTorch eval-mode semantics).
    compute_dtype=bfloat16 mirrors the kernel's MXU precision (f32 accumulate)."""
    dn = ('NCHW', 'OIHW', 'NCHW')

    def conv(a, w):
        return jax.lax.conv_general_dilated(
            a.astype(compute_dtype), w.astype(compute_dtype), (1, 1), 'SAME',
            dimension_numbers=dn, preferred_element_type=jnp.float32)

    y = jnp.maximum(conv(x, w1) + b1.reshape(1, -1, 1, 1), 0.0)
    y = jnp.maximum(conv(y, w2) + b2.reshape(1, -1, 1, 1), 0.0)
    return y


if __name__ == "__main__":
    N, Cin, Cout, H, W = 2, 4, 8, 16, 16
    key = jax.random.PRNGKey(0)
    kx, kw1, kb1, kw2, kb2 = jax.random.split(key, 5)

    x = jax.random.normal(kx, (N, Cin, H, W), jnp.float32)
    # deterministic synthetic parameters (shapes per nn.Conv2d(in_ch, out_ch, 3))
    w1 = jax.random.normal(kw1, (Cout, Cin, 3, 3), jnp.float32) * 0.1
    b1 = jax.random.normal(kb1, (Cout,), jnp.float32) * 0.1
    w2 = jax.random.normal(kw2, (Cout, Cout, 3, 3), jnp.float32) * 0.1
    b2 = jax.random.normal(kb2, (Cout,), jnp.float32) * 0.1

    out = jax.block_until_ready(double_conv(x, w1, b1, w2, b2))
    ref_bf16 = jax.block_until_ready(
        ref_double_conv(x, w1, b1, w2, b2, compute_dtype=jnp.bfloat16))
    ref_f32 = jax.block_until_ready(ref_double_conv(x, w1, b1, w2, b2))

    assert out.shape == (N, Cout, H, W), out.shape
    # tight check against a reference using the same bf16-input / f32-accumulate math
    assert jnp.allclose(out, ref_bf16, atol=1e-2, rtol=1e-2), \
        float(jnp.max(jnp.abs(out - ref_bf16)))
    # loose check against the pure-f32 PyTorch-equivalent reference (bf16 rounding)
    assert jnp.allclose(out, ref_f32, atol=1e-1, rtol=1e-1), \
        float(jnp.max(jnp.abs(out - ref_f32)))
    print("KERNEL_OK")
</pallas_src>

<mosaic_0001>
module attributes {stable_mosaic.version = 11 : i64} {
  func.func @double_conv_kernel(%arg0: i32, %arg1: memref<2x16x64xf32, #tpu.memory_space<vmem>>, %arg2: memref<192x128xbf16, #tpu.memory_space<vmem>>, %arg3: memref<1x128xf32, #tpu.memory_space<vmem>>, %arg4: memref<384x128xbf16, #tpu.memory_space<vmem>>, %arg5: memref<1x128xf32, #tpu.memory_space<vmem>>, %arg6: memref<2x16x128xf32, #tpu.memory_space<vmem>>, %arg7: memref<2x18x64xf32, #tpu.memory_space<vmem>>, %arg8: memref<2x18x128xf32, #tpu.memory_space<vmem>>) attributes {dimension_semantics = [#tpu.dimension_semantics<parallel>], iteration_bounds = array<i64: 1>, scalar_prefetch = 0 : i64, scratch_operands = 2 : i64, tpu.core_type = #tpu.core_type<tc>, window_params = [{transform_indices = @transform_0, window_bounds = array<i64: 2, 16, 64>}, {pipeline_mode = #tpu.pipeline_mode<synchronous>, transform_indices = @transform_1, window_bounds = array<i64: 192, 128>}, {pipeline_mode = #tpu.pipeline_mode<synchronous>, transform_indices = @transform_2, window_bounds = array<i64: 1, 128>}, {pipeline_mode = #tpu.pipeline_mode<synchronous>, transform_indices = @transform_3, window_bounds = array<i64: 384, 128>}, {pipeline_mode = #tpu.pipeline_mode<synchronous>, transform_indices = @transform_4, window_bounds = array<i64: 1, 128>}, {transform_indices = @transform_5, window_bounds = array<i64: 2, 16, 128>}]} {
    %cst = arith.constant 0.000000e+00 : f32
    %0 = vector.broadcast %cst : f32 to vector<1x64xf32>
    %c0 = arith.constant 0 : index
    %c0_0 = arith.constant 0 : index
    %c0_1 = arith.constant 0 : index
    %1 = vector.load %arg7[%c0, %c0_0, %c0_1] : memref<2x18x64xf32, #tpu.memory_space<vmem>>, vector<1x1x64xf32>
    %2 = vector.shape_cast %1 : vector<1x1x64xf32> to vector<1x64xf32>
    %3 = vector.shape_cast %0 : vector<1x64xf32> to vector<1x1x64xf32>
    tpu.vector_store %arg7[%c0, %c0_0, %c0_1], %3 {strides = array<i32>} : memref<2x18x64xf32, #tpu.memory_space<vmem>>, vector<1x1x64xf32>,
    %c0_2 = arith.constant 0 : index
    %c17 = arith.constant 17 : index
    %c0_3 = arith.constant 0 : index
    %4 = vector.load %arg7[%c0_2, %c17, %c0_3] : memref<2x18x64xf32, #tpu.memory_space<vmem>>, vector<1x1x64xf32>
    %5 = vector.shape_cast %4 : vector<1x1x64xf32> to vector<1x64xf32>
    %6 = vector.shape_cast %0 : vector<1x64xf32> to vector<1x1x64xf32>
    tpu.vector_store %arg7[%c0_2, %c17, %c0_3], %6 {strides = array<i32>} : memref<2x18x64xf32, #tpu.memory_space<vmem>>, vector<1x1x64xf32>,
    %c0_4 = arith.constant 0 : index
    %c0_5 = arith.constant 0 : index
    %c0_6 = arith.constant 0 : index
    %7 = vector.load %arg1[%c0_4, %c0_5, %c0_6] : memref<2x16x64xf32, #tpu.memory_space<vmem>>, vector<1x16x64xf32>
    %8 = vector.shape_cast %7 : vector<1x16x64xf32> to vector<16x64xf32>
    %c0_7 = arith.constant 0 : index
    %c1 = arith.constant 1 : index
    %c0_8 = arith.constant 0 : index
    %9 = vector.load %arg7[%c0_7, %c1, %c0_8] : memref<2x18x64xf32, #tpu.memory_space<vmem>>, vector<1x16x64xf32>
    %10 = vector.shape_cast %9 : vector<1x16x64xf32> to vector<16x64xf32>
    %11 = vector.shape_cast %8 : vector<16x64xf32> to vector<1x16x64xf32>
    tpu.vector_store %arg7[%c0_7, %c1, %c0_8], %11 {strides = array<i32>} : memref<2x18x64xf32, #tpu.memory_space<vmem>>, vector<1x16x64xf32>,
    %c1_9 = arith.constant 1 : index
    %c0_10 = arith.constant 0 : index
    %c0_11 = arith.constant 0 : index
    %12 = vector.load %arg7[%c1_9, %c0_10, %c0_11] : memref<2x18x64xf32, #tpu.memory_space<vmem>>, vector<1x1x64xf32>
    %13 = vector.shape_cast %12 : vector<1x1x64xf32> to vector<1x64xf32>
    %14 = vector.shape_cast %0 : vector<1x64xf32> to vector<1x1x64xf32>
    tpu.vector_store %arg7[%c1_9, %c0_10, %c0_11], %14 {strides = array<i32>} : memref<2x18x64xf32, #tpu.memory_space<vmem>>, vector<1x1x64xf32>,
    %c1_12 = arith.constant 1 : index
    %c17_13 = arith.constant 17 : index
    %c0_14 = arith.constant 0 : index
    %15 = vector.load %arg7[%c1_12, %c17_13, %c0_14] : memref<2x18x64xf32, #tpu.memory_space<vmem>>, vector<1x1x64xf32>
    %16 = vector.shape_cast %15 : vector<1x1x64xf32> to vector<1x64xf32>
    %17 = vector.shape_cast %0 : vector<1x64xf32> to vector<1x1x64xf32>
    tpu.vector_store %arg7[%c1_12, %c17_13, %c0_14], %17 {strides = array<i32>} : memref<2x18x64xf32, #tpu.memory_space<vmem>>, vector<1x1x64xf32>,
    %c1_15 = arith.constant 1 : index
    %c0_16 = arith.constant 0 : index
    %c0_17 = arith.constant 0 : index
    %18 = vector.load %arg1[%c1_15, %c0_16, %c0_17] : memref<2x16x64xf32, #tpu.memory_space<vmem>>, vector<1x16x64xf32>
    %19 = vector.shape_cast %18 : vector<1x16x64xf32> to vector<16x64xf32>
    %c1_18 = arith.constant 1 : index
    %c1_19 = arith.constant 1 : index
    %c0_20 = arith.constant 0 : index
    %20 = vector.load %arg7[%c1_18, %c1_19, %c0_20] : memref<2x18x64xf32, #tpu.memory_space<vmem>>, vector<1x16x64xf32>
    %21 = vector.shape_cast %20 : vector<1x16x64xf32> to vector<16x64xf32>
    %22 = vector.shape_cast %19 : vector<16x64xf32> to vector<1x16x64xf32>
    tpu.vector_store %arg7[%c1_18, %c1_19, %c0_20], %22 {strides = array<i32>} : memref<2x18x64xf32, #tpu.memory_space<vmem>>, vector<1x16x64xf32>,
    %c0_21 = arith.constant 0 : index
    %c0_22 = arith.constant 0 : index
    %c0_23 = arith.constant 0 : index
    %23 = vector.load %arg7[%c0_21, %c0_22, %c0_23] : memref<2x18x64xf32, #tpu.memory_space<vmem>>, vector<1x16x64xf32>
    %24 = vector.shape_cast %23 : vector<1x16x64xf32> to vector<16x64xf32>
    %c0_24 = arith.constant 0 : index
    %c1_25 = arith.constant 1 : index
    %c0_26 = arith.constant 0 : index
    %25 = vector.load %arg7[%c0_24, %c1_25, %c0_26] : memref<2x18x64xf32, #tpu.memory_space<vmem>>, vector<1x16x64xf32>
    %26 = vector.shape_cast %25 : vector<1x16x64xf32> to vector<16x64xf32>
    %c0_27 = arith.constant 0 : index
    %c2 = arith.constant 2 : index
    %c0_28 = arith.constant 0 : index
    %27 = vector.load %arg7[%c0_27, %c2, %c0_28] : memref<2x18x64xf32, #tpu.memory_space<vmem>>, vector<1x16x64xf32>
    %28 = vector.shape_cast %27 : vector<1x16x64xf32> to vector<16x64xf32>
    %29 = tpu.concatenate %24, %26, %28 in 1 : vector<16x64xf32>, vector<16x64xf32>, vector<16x64xf32> -> vector<16x192xf32>
    %c1_29 = arith.constant 1 : index
    %c0_30 = arith.constant 0 : index
    %c0_31 = arith.constant 0 : index
    %30 = vector.load %arg7[%c1_29, %c0_30, %c0_31] : memref<2x18x64xf32, #tpu.memory_space<vmem>>, vector<1x16x64xf32>
    %31 = vector.shape_cast %30 : vector<1x16x64xf32> to vector<16x64xf32>
    %c1_32 = arith.constant 1 : index
    %c1_33 = arith.constant 1 : index
    %c0_34 = arith.constant 0 : index
    %32 = vector.load %arg7[%c1_32, %c1_33, %c0_34] : memref<2x18x64xf32, #tpu.memory_space<vmem>>, vector<1x16x64xf32>
    %33 = vector.shape_cast %32 : vector<1x16x64xf32> to vector<16x64xf32>
    %c1_35 = arith.constant 1 : index
    %c2_36 = arith.constant 2 : index
    %c0_37 = arith.constant 0 : index
    %34 = vector.load %arg7[%c1_35, %c2_36, %c0_37] : memref<2x18x64xf32, #tpu.memory_space<vmem>>, vector<1x16x64xf32>
    %35 = vector.shape_cast %34 : vector<1x16x64xf32> to vector<16x64xf32>
    %36 = tpu.concatenate %31, %33, %35 in 1 : vector<16x64xf32>, vector<16x64xf32>, vector<16x64xf32> -> vector<16x192xf32>
    %37 = tpu.concatenate %29, %36 in 0 : vector<16x192xf32>, vector<16x192xf32> -> vector<32x192xf32>
    %38 = arith.truncf %37 : vector<32x192xf32> to vector<32x192xbf16>
    %c0_38 = arith.constant 0 : index
    %c0_39 = arith.constant 0 : index
    %39 = vector.load %arg2[%c0_38, %c0_39] : memref<192x128xbf16, #tpu.memory_space<vmem>>, vector<192x128xbf16>
    %cst_40 = arith.constant dense<0.000000e+00> : vector<32x128xf32>
    %40 = tpu.matmul %38, %39, %cst_40 {dimension_numbers = #tpu.dot_dimension_numbers<[1], [0], [0], [1], [0, 0, 1, 1], [], []>} : vector<32x192xbf16>, vector<192x128xbf16>, vector<32x128xf32> -> vector<32x128xf32>
    %c0_41 = arith.constant 0 : index
    %c0_42 = arith.constant 0 : index
    %41 = vector.load %arg3[%c0_41, %c0_42] : memref<1x128xf32, #tpu.memory_space<vmem>>, vector<1x128xf32>
    %42 = vector.broadcast %41 : vector<1x128xf32> to vector<32x128xf32>
    %43 = arith.addf %40, %42 : vector<32x128xf32>
    %cst_43 = arith.constant 0.000000e+00 : f32
    %44 = vector.broadcast %cst_43 : f32 to vector<32x128xf32>
    %45 = arith.maximumf %43, %44 : vector<32x128xf32>
    %cst_44 = arith.constant 0.000000e+00 : f32
    %46 = vector.broadcast %cst_44 : f32 to vector<1x128xf32>
    %c0_45 = arith.constant 0 : index
    %c0_46 = arith.constant 0 : index
    %c0_47 = arith.constant 0 : index
    %47 = vector.load %arg8[%c0_45, %c0_46, %c0_47] : memref<2x18x128xf32, #tpu.memory_space<vmem>>, vector<1x1x128xf32>
    %48 = vector.shape_cast %47 : vector<1x1x128xf32> to vector<1x128xf32>
    %49 = vector.shape_cast %46 : vector<1x128xf32> to vector<1x1x128xf32>
    tpu.vector_store %arg8[%c0_45, %c0_46, %c0_47], %49 {strides = array<i32>} : memref<2x18x128xf32, #tpu.memory_space<vmem>>, vector<1x1x128xf32>,
    %c0_48 = arith.constant 0 : index
    %c17_49 = arith.constant 17 : index
    %c0_50 = arith.constant 0 : index
    %50 = vector.load %arg8[%c0_48, %c17_49, %c0_50] : memref<2x18x128xf32, #tpu.memory_space<vmem>>, vector<1x1x128xf32>
    %51 = vector.shape_cast %50 : vector<1x1x128xf32> to vector<1x128xf32>
    %52 = vector.shape_cast %46 : vector<1x128xf32> to vector<1x1x128xf32>
    tpu.vector_store %arg8[%c0_48, %c17_49, %c0_50], %52 {strides = array<i32>} : memref<2x18x128xf32, #tpu.memory_space<vmem>>, vector<1x1x128xf32>,
    %53 = vector.extract_strided_slice %45 {offsets = [0, 0], sizes = [16, 128], strides = [1, 1]} : vector<32x128xf32> to vector<16x128xf32>
    %c0_51 = arith.constant 0 : index
    %c1_52 = arith.constant 1 : index
    %c0_53 = arith.constant 0 : index
    %54 = vector.load %arg8[%c0_51, %c1_52, %c0_53] : memref<2x18x128xf32, #tpu.memory_space<vmem>>, vector<1x16x128xf32>
    %55 = vector.shape_cast %54 : vector<1x16x128xf32> to vector<16x128xf32>
    %56 = vector.shape_cast %53 : vector<16x128xf32> to vector<1x16x128xf32>
    tpu.vector_store %arg8[%c0_51, %c1_52, %c0_53], %56 {strides = array<i32>} : memref<2x18x128xf32, #tpu.memory_space<vmem>>, vector<1x16x128xf32>,
    %c1_54 = arith.constant 1 : index
    %c0_55 = arith.constant 0 : index
    %c0_56 = arith.constant 0 : index
    %57 = vector.load %arg8[%c1_54, %c0_55, %c0_56] : memref<2x18x128xf32, #tpu.memory_space<vmem>>, vector<1x1x128xf32>
    %58 = vector.shape_cast %57 : vector<1x1x128xf32> to vector<1x128xf32>
    %59 = vector.shape_cast %46 : vector<1x128xf32> to vector<1x1x128xf32>
    tpu.vector_store %arg8[%c1_54, %c0_55, %c0_56], %59 {strides = array<i32>} : memref<2x18x128xf32, #tpu.memory_space<vmem>>, vector<1x1x128xf32>,
    %c1_57 = arith.constant 1 : index
    %c17_58 = arith.constant 17 : index
    %c0_59 = arith.constant 0 : index
    %60 = vector.load %arg8[%c1_57, %c17_58, %c0_59] : memref<2x18x128xf32, #tpu.memory_space<vmem>>, vector<1x1x128xf32>
    %61 = vector.shape_cast %60 : vector<1x1x128xf32> to vector<1x128xf32>
    %62 = vector.shape_cast %46 : vector<1x128xf32> to vector<1x1x128xf32>
    tpu.vector_store %arg8[%c1_57, %c17_58, %c0_59], %62 {strides = array<i32>} : memref<2x18x128xf32, #tpu.memory_space<vmem>>, vector<1x1x128xf32>,
    %63 = vector.extract_strided_slice %45 {offsets = [16, 0], sizes = [16, 128], strides = [1, 1]} : vector<32x128xf32> to vector<16x128xf32>
    %c1_60 = arith.constant 1 : index
    %c1_61 = arith.constant 1 : index
    %c0_62 = arith.constant 0 : index
    %64 = vector.load %arg8[%c1_60, %c1_61, %c0_62] : memref<2x18x128xf32, #tpu.memory_space<vmem>>, vector<1x16x128xf32>
    %65 = vector.shape_cast %64 : vector<1x16x128xf32> to vector<16x128xf32>
    %66 = vector.shape_cast %63 : vector<16x128xf32> to vector<1x16x128xf32>
    tpu.vector_store %arg8[%c1_60, %c1_61, %c0_62], %66 {strides = array<i32>} : memref<2x18x128xf32, #tpu.memory_space<vmem>>, vector<1x16x128xf32>,
    %c0_63 = arith.constant 0 : index
    %c0_64 = arith.constant 0 : index
    %c0_65 = arith.constant 0 : index
    %67 = vector.load %arg8[%c0_63, %c0_64, %c0_65] : memref<2x18x128xf32, #tpu.memory_space<vmem>>, vector<1x16x128xf32>
    %68 = vector.shape_cast %67 : vector<1x16x128xf32> to vector<16x128xf32>
    %c0_66 = arith.constant 0 : index
    %c1_67 = arith.constant 1 : index
    %c0_68 = arith.constant 0 : index
    %69 = vector.load %arg8[%c0_66, %c1_67, %c0_68] : memref<2x18x128xf32, #tpu.memory_space<vmem>>, vector<1x16x128xf32>
    %70 = vector.shape_cast %69 : vector<1x16x128xf32> to vector<16x128xf32>
    %c0_69 = arith.constant 0 : index
    %c2_70 = arith.constant 2 : index
    %c0_71 = arith.constant 0 : index
    %71 = vector.load %arg8[%c0_69, %c2_70, %c0_71] : memref<2x18x128xf32, #tpu.memory_space<vmem>>, vector<1x16x128xf32>
    %72 = vector.shape_cast %71 : vector<1x16x128xf32> to vector<16x128xf32>
    %73 = tpu.concatenate %68, %70, %72 in 1 : vector<16x128xf32>, vector<16x128xf32>, vector<16x128xf32> -> vector<16x384xf32>
    %c1_72 = arith.constant 1 : index
    %c0_73 = arith.constant 0 : index
    %c0_74 = arith.constant 0 : index
    %74 = vector.load %arg8[%c1_72, %c0_73, %c0_74] : memref<2x18x128xf32, #tpu.memory_space<vmem>>, vector<1x16x128xf32>
    %75 = vector.shape_cast %74 : vector<1x16x128xf32> to vector<16x128xf32>
    %c1_75 = arith.constant 1 : index
    %c1_76 = arith.constant 1 : index
    %c0_77 = arith.constant 0 : index
    %76 = vector.load %arg8[%c1_75, %c1_76, %c0_77] : memref<2x18x128xf32, #tpu.memory_space<vmem>>, vector<1x16x128xf32>
    %77 = vector.shape_cast %76 : vector<1x16x128xf32> to vector<16x128xf32>
    %c1_78 = arith.constant 1 : index
    %c2_79 = arith.constant 2 : index
    %c0_80 = arith.constant 0 : index
    %78 = vector.load %arg8[%c1_78, %c2_79, %c0_80] : memref<2x18x128xf32, #tpu.memory_space<vmem>>, vector<1x16x128xf32>
    %79 = vector.shape_cast %78 : vector<1x16x128xf32> to vector<16x128xf32>
    %80 = tpu.concatenate %75, %77, %79 in 1 : vector<16x128xf32>, vector<16x128xf32>, vector<16x128xf32> -> vector<16x384xf32>
    %81 = tpu.concatenate %73, %80 in 0 : vector<16x384xf32>, vector<16x384xf32> -> vector<32x384xf32>
    %82 = arith.truncf %81 : vector<32x384xf32> to vector<32x384xbf16>
    %c0_81 = arith.constant 0 : index
    %c0_82 = arith.constant 0 : index
    %83 = vector.load %arg4[%c0_81, %c0_82] : memref<384x128xbf16, #tpu.memory_space<vmem>>, vector<384x128xbf16>
    %cst_83 = arith.constant dense<0.000000e+00> : vector<32x128xf32>
    %84 = tpu.matmul %82, %83, %cst_83 {dimension_numbers = #tpu.dot_dimension_numbers<[1], [0], [0], [1], [0, 0, 1, 1], [], []>} : vector<32x384xbf16>, vector<384x128xbf16>, vector<32x128xf32> -> vector<32x128xf32>
    %c0_84 = arith.constant 0 : index
    %c0_85 = arith.constant 0 : index
    %85 = vector.load %arg5[%c0_84, %c0_85] : memref<1x128xf32, #tpu.memory_space<vmem>>, vector<1x128xf32>
    %86 = vector.broadcast %85 : vector<1x128xf32> to vector<32x128xf32>
    %87 = arith.addf %84, %86 : vector<32x128xf32>
    %cst_86 = arith.constant 0.000000e+00 : f32
    %88 = vector.broadcast %cst_86 : f32 to vector<32x128xf32>
    %89 = arith.maximumf %87, %88 : vector<32x128xf32>
    %90 = vector.shape_cast %89 : vector<32x128xf32> to vector<2x16x128xf32>
    %c0_87 = arith.constant 0 : index
    %c0_88 = arith.constant 0 : index
    %c0_89 = arith.constant 0 : index
    %91 = vector.load %arg6[%c0_87, %c0_88, %c0_89] : memref<2x16x128xf32, #tpu.memory_space<vmem>>, vector<2x16x128xf32>
    tpu.vector_store %arg6[%c0_87, %c0_88, %c0_89], %90 {strides = array<i32>} : memref<2x16x128xf32, #tpu.memory_space<vmem>>, vector<2x16x128xf32>,
    return
  }
  func.func @transform_0(%arg0: i32) -> (i32, i32, i32) {
    %c0_i32 = arith.constant 0 : i32
    %c0_i32_0 = arith.constant 0 : i32
    %c0_i32_1 = arith.constant 0 : i32
    return %arg0, %c0_i32, %c0_i32_0 : i32, i32, i32
  }
  func.func @transform_1(%arg0: i32) -> (i32, i32) {
    %c0_i32 = arith.constant 0 : i32
    %c0_i32_0 = arith.constant 0 : i32
    %c0_i32_1 = arith.constant 0 : i32
    return %c0_i32, %c0_i32_0 : i32, i32
  }
  func.func @transform_2(%arg0: i32) -> (i32, i32) {
    %c0_i32 = arith.constant 0 : i32
    %c0_i32_0 = arith.constant 0 : i32
    %c0_i32_1 = arith.constant 0 : i32
    return %c0_i32, %c0_i32_0 : i32, i32
  }
  func.func @transform_3(%arg0: i32) -> (i32, i32) {
    %c0_i32 = arith.constant 0 : i32
    %c0_i32_0 = arith.constant 0 : i32
    %c0_i32_1 = arith.constant 0 : i32
    return %c0_i32, %c0_i32_0 : i32, i32
  }
  func.func @transform_4(%arg0: i32) -> (i32, i32) {
    %c0_i32 = arith.constant 0 : i32
    %c0_i32_0 = arith.constant 0 : i32
    %c0_i32_1 = arith.constant 0 : i32
    return %c0_i32, %c0_i32_0 : i32, i32
  }
  func.func @transform_5(%arg0: i32) -> (i32, i32, i32) {
    %c0_i32 = arith.constant 0 : i32
    %c0_i32_0 = arith.constant 0 : i32
    %c0_i32_1 = arith.constant 0 : i32
    return %arg0, %c0_i32, %c0_i32_0 : i32, i32, i32
  }
}

</mosaic_0001>

<llo_original>
// kernel: tpu_custom_call.1
$region0: #{tpu_custom_call.1}
  #allocation0 [shape = 'u32[]', space=smem, size = 0x4, offset = 0x4, fixed_abs, tag = 'smem constant byte address 0x4 - core index']
  #allocation1 [shape = 'u32[144,128]{1,0:T(1,128)}', space=vmem, size = 0x12000, scoped, tag = 'internal scratch']
  #allocation2 [shape = 'f32[2,18,64]{2,1,0:T(8,128)}', space=vmem, size = 0x6000, scoped, tag = 'scratch operand']
  #allocation3 [shape = 'f32[2,18,128]{2,1,0:T(8,128)}', space=vmem, size = 0x6000, scoped, tag = 'scratch operand']
  %s0 = inlined_call_operand.hbm [shape: f32[2,16,64], index: 0, kind: input, shape index: {}]
  %s1 = inlined_call_operand.hbm [shape: bf16[192,128], index: 1, kind: input, shape index: {}]
  %s2 = inlined_call_operand.vmem [shape: f32[1,128], index: 2, kind: input, shape index: {}]
  %s3 = inlined_call_operand.hbm [shape: bf16[384,128], index: 3, kind: input, shape index: {}]
  %s4 = inlined_call_operand.vmem [shape: f32[1,128], index: 4, kind: input, shape index: {}]
  %s5 = inlined_call_operand.hbm [shape: f32[2,16,128], index: 5, kind: output, shape index: {}]
  %s6 = sld [smem:[#allocation0]]
  $region42: #{tpu_custom_call.1} parent=0
    _
  %s8 = ssub.s32 1, %s6
  %s9 = scalar_select 0, %s8, %s6
  $region1: #{tpu_custom_call.1} parent=0
    #allocation4 [shape = 'u8[16384]{0}', space=vmem, size = 0x4000, scoped, tag = 'input window, operand 0, single buffered']
    #allocation5 [shape = 's32[1]{0}', space=sflag, size = 0x4, scoped, tag = 'scoped memory for tpu_custom_call.1']
    #allocation6 [shape = 's32[1]{0}', space=sflag, size = 0x4, scoped, tag = 'scoped memory for tpu_custom_call.1']
    #allocation7 [shape = 'u8[49152]{0}', space=vmem, size = 0xc000, scoped, tag = 'input window, operand 1, single buffered']
    #allocation8 [shape = 's32[1]{0}', space=sflag, size = 0x4, scoped, tag = 'scoped memory for tpu_custom_call.1']
    #allocation9 [shape = 'u8[98304]{0}', space=vmem, size = 0x18000, scoped, tag = 'input window, operand 3, single buffered']
    #allocation10 [shape = 'u8[16384]{0}', space=vmem, size = 0x4000, scoped, tag = 'output window, operand 0, single buffered']
    %10 = vsyncpa [#allocation5], 0
    %11 = vsyncpa [#allocation8], 0
    %12 = vsyncpa [#allocation6], 0
    // Predicated region
    $region2: #{tpu_custom_call.1} parent=1 // pred_check
      _
    $region3: #{tpu_custom_call.1} parent=1 // pred_check_branch
      %14 = sbr.rel (0) target = $region5
    $region4: #{tpu_custom_call.1} parent=1 // pred_region
      %s16 = ssub.s32 512, 512
      %17 = vsyncadd [#allocation5], %s16
      %s18 = sshll.u32 [#allocation4], 4
      %s19 = int_to_ptr.vmem [resolvable:$true] %s18
      %24 = dma.hbm_to_vmem [thread:$0]  %s0, 512, %s19, [#allocation5], 128, 128, 8
    $region5: #{tpu_custom_call.1} parent=1 // pred_fallthru
      _
    // Predicated region
    $region6: #{tpu_custom_call.1} parent=1 // pred_check
      _
    $region7: #{tpu_custom_call.1} parent=1 // pred_check_branch
      %26 = sbr.rel (0) target = $region9
    $region8: #{tpu_custom_call.1} parent=1 // pred_region
      %s28 = ssub.s32 1536, 1536
      %29 = vsyncadd [#allocation8], %s28
      %s30 = sshll.u32 [#allocation7], 4
      %s31 = int_to_ptr.vmem [resolvable:$true] %s30
      %36 = dma.hbm_to_vmem [thread:$0]  %s1, 1536, %s31, [#allocation8], 64, 64, 4
    $region9: #{tpu_custom_call.1} parent=1 // pred_fallthru
      _
    // Predicated region
    $region10: #{tpu_custom_call.1} parent=1 // pred_check
      _
    $region11: #{tpu_custom_call.1} parent=1 // pred_check_branch
      %38 = sbr.rel (0) target = $region13
    $region12: #{tpu_custom_call.1} parent=1 // pred_region
      _
    $region13: #{tpu_custom_call.1} parent=1 // pred_fallthru
      _
    // Predicated region
    $region14: #{tpu_custom_call.1} parent=1 // pred_check
      _
    $region15: #{tpu_custom_call.1} parent=1 // pred_check_branch
      %40 = sbr.rel (0) target = $region17
    $region16: #{tpu_custom_call.1} parent=1 // pred_region
      %s42 = ssub.s32 3072, 3072
      %43 = vsyncadd [#allocation8], %s42
      %s44 = sshll.u32 [#allocation9], 4
      %s45 = int_to_ptr.vmem [resolvable:$true] %s44
      %50 = dma.hbm_to_vmem [thread:$0]  %s3, 3072, %s45, [#allocation8], 64, 64, 4
    $region17: #{tpu_custom_call.1} parent=1 // pred_fallthru
      _
    // Predicated region
    $region18: #{tpu_custom_call.1} parent=1 // pred_check
      _
    $region19: #{tpu_custom_call.1} parent=1 // pred_check_branch
      %52 = sbr.rel (0) target = $region21
    $region20: #{tpu_custom_call.1} parent=1 // pred_region
      _
    $region21: #{tpu_custom_call.1} parent=1 // pred_fallthru
      _
    // Predicated region
    $region22: #{tpu_custom_call.1} parent=1 // pred_check
      _
    $region23: #{tpu_custom_call.1} parent=1 // pred_check_branch
      %54 = sbr.rel (0) target = $region25
    $region24: #{tpu_custom_call.1} parent=1 // pred_region
      %55 = dma.done [#allocation5], 512
    $region25: #{tpu_custom_call.1} parent=1 // pred_fallthru
      _
    // Predicated region
    $region26: #{tpu_custom_call.1} parent=1 // pred_check
      _
    $region27: #{tpu_custom_call.1} parent=1 // pred_check_branch
      %57 = sbr.rel (0) target = $region29
    $region28: #{tpu_custom_call.1} parent=1 // pred_region
      %58 = dma.done [#allocation8], 1536
    $region29: #{tpu_custom_call.1} parent=1 // pred_fallthru
      _
    // Predicated region
    $region30: #{tpu_custom_call.1} parent=1 // pred_check
      _
    $region31: #{tpu_custom_call.1} parent=1 // pred_check_branch
      %60 = sbr.rel (0) target = $region33
    $region32: #{tpu_custom_call.1} parent=1 // pred_region
      %61 = dma.done [#allocation8], 3072
    $region33: #{tpu_custom_call.1} parent=1 // pred_fallthru
      _
    %vm63 = vcmask 516096
    %64 = vst.msk [vmem:[#allocation2] sm:$0x1] %vm63, 0.0
    %65 = vst.msk [vmem:[#allocation2 + $0x11] sm:$0x1] %vm63, 0.0
    %v66 = vld [vmem:[#allocation4] sm:$0xff]
    %v67 = vld [vmem:[#allocation4 + $0x8] sm:$0xff]
    %vm68 = vcmask 523264
    %69 = vst.msk [vmem:[#allocation2 + $0x1] sm:$0xff] %vm68, %v66
    %70 = vst.msk [vmem:[#allocation2 + $0x9] sm:$0xff] %vm68, %v67
    %s71 = scalar_lea.vmem [#allocation2], 24
    %72 = vst.msk [vmem:[%s71] sm:$0x1] %vm63, 0.0
    %73 = vst.msk [vmem:[%s71 + $0x11] sm:$0x1] %vm63, 0.0
    %s74 = scalar_lea.vmem [#allocation4], 16
    %v75 = vld [vmem:[%s74] sm:$0xff]
    %v76 = vld [vmem:[%s74 + $0x8] sm:$0xff]
    %77 = vst.msk [vmem:[%s71 + $0x1] sm:$0xff] %vm68, %v75
    %78 = vst.msk [vmem:[%s71 + $0x9] sm:$0xff] %vm68, %v76
    %v79 = vld [vmem:[#allocation2] sm:$0xff]
    %v80 = vld [vmem:[#allocation2 + $0x8] sm:$0xff]
    %v81 = vld [vmem:[#allocation2 + $0x1] sm:$0xff]
    %v82 = vld [vmem:[#allocation2 + $0x9] sm:$0xff]
    %v83 = vld [vmem:[#allocation2 + $0x2] sm:$0xff]
    %v84 = vld [vmem:[#allocation2 + $0xa] sm:$0xff]
    %87 = vrot.lane.b32.xlu0 %v81, 64
    %v88 = vpop.permute.xlu0 %87
    %89 = vrot.lane.b32.xlu0 %v82, 64
    %v90 = vpop.permute.xlu0 %89
    %v93 = vsel %vm68, %v79, %v88
    %v94 = vsel %vm68, %v80, %v90
    %v95 = vld [vmem:[%s71] sm:$0xff]
    %v96 = vld [vmem:[%s71 + $0x8] sm:$0xff]
    %v97 = vld [vmem:[%s71 + $0x1] sm:$0xff]
    %v98 = vld [vmem:[%s71 + $0x9] sm:$0xff]
    %v99 = vld [vmem:[%s71 + $0x2] sm:$0xff]
    %v100 = vld [vmem:[%s71 + $0xa] sm:$0xff]
    %103 = vrot.lane.b32.xlu0 %v97, 64
    %v104 = vpop.permute.xlu0 %103
    %105 = vrot.lane.b32.xlu0 %v98, 64
    %v106 = vpop.permute.xlu0 %105
    %v109 = vsel %vm68, %v95, %v104
    %v110 = vsel %vm68, %v96, %v106
    %v111 = vpack.c.bf16 %v94, %v93
    %v112 = vpack.c.bf16 %v84, %v83
    %v113 = vpack.c.bf16 %v110, %v109
    %v114 = vpack.c.bf16 %v100, %v99
    %v115 = vld [vmem:[#allocation7] sm:$0xf]
    %v116 = vld [vmem:[#allocation7 + $0x4] sm:$0xf]
    %v117 = vld [vmem:[#allocation7 + $0x8] sm:$0xf]
    %v118 = vld [vmem:[#allocation7 + $0xc] sm:$0xf]
    %v119 = vld [vmem:[#allocation7 + $0x10] sm:$0xf]
    %v120 = vld [vmem:[#allocation7 + $0x14] sm:$0xf]
    %v121 = vld [vmem:[#allocation7 + $0x18] sm:$0xf]
    %v122 = vld [vmem:[#allocation7 + $0x1c] sm:$0xf]
    %v123 = vld [vmem:[#allocation7 + $0x20] sm:$0xf]
    %v124 = vld [vmem:[#allocation7 + $0x24] sm:$0xf]
    %v125 = vld [vmem:[#allocation7 + $0x28] sm:$0xf]
    %v126 = vld [vmem:[#allocation7 + $0x2c] sm:$0xf]
    %v127 = vld [vmem:[#allocation7 + $0x30] sm:$0xf]
    %v128 = vld [vmem:[#allocation7 + $0x34] sm:$0xf]
    %v129 = vld [vmem:[#allocation7 + $0x38] sm:$0xf]
    %v130 = vld [vmem:[#allocation7 + $0x3c] sm:$0xf]
    %v131 = vld [vmem:[#allocation7 + $0x40] sm:$0xf]
    %v132 = vld [vmem:[#allocation7 + $0x44] sm:$0xf]
    %v133 = vld [vmem:[#allocation7 + $0x48] sm:$0xf]
    %v134 = vld [vmem:[#allocation7 + $0x4c] sm:$0xf]
    %v135 = vld [vmem:[#allocation7 + $0x50] sm:$0xf]
    %v136 = vld [vmem:[#allocation7 + $0x54] sm:$0xf]
    %v137 = vld [vmem:[#allocation7 + $0x58] sm:$0xf]
    %v138 = vld [vmem:[#allocation7 + $0x5c] sm:$0xf]
    %v139 = vld [vmem:[%s2] sm:$0x1]
    %v141 = vlaneseq
    %v142 = vshrl.u32 %v141, 7
    %v143 = vsub.s32 0, %v142
    %v144 = vrot.slane %v139, %v143
    %v170 = vunpack.c.l.b16 %v115
    %v171 = vunpack.c.l.b16 %v116
    %v172 = vunpack.c.l.b16 %v117
    %v173 = vunpack.c.l.b16 %v118
    %v174 = vunpack.c.l.b16 %v119
    %v175 = vunpack.c.l.b16 %v120
    %v176 = vunpack.c.l.b16 %v121
    %v177 = vunpack.c.l.b16 %v122
    %v178 = vunpack.c.l.b16 %v123
    %v179 = vunpack.c.l.b16 %v124
    %v180 = vunpack.c.l.b16 %v125
    %v181 = vunpack.c.l.b16 %v126
    %v182 = vunpack.c.l.b16 %v127
    %v183 = vunpack.c.l.b16 %v128
    %v184 = vunpack.c.l.b16 %v129
    %v185 = vunpack.c.l.b16 %v130
    %v186 = vunpack.c.l.b16 %v131
    %v187 = vunpack.c.l.b16 %v132
    %v188 = vunpack.c.l.b16 %v133
    %v189 = vunpack.c.l.b16 %v134
    %v190 = vunpack.c.l.b16 %v135
    %v191 = vunpack.c.l.b16 %v136
    %v192 = vunpack.c.l.b16 %v137
    %v193 = vunpack.c.l.b16 %v138
    %v194 = vpack.c.b16 %v171, %v170
    %v195 = vpack.c.b16 %v173, %v172
    %v196 = vpack.c.b16 %v175, %v174
    %v197 = vpack.c.b16 %v177, %v176
    %v198 = vpack.c.b16 %v179, %v178
    %v199 = vpack.c.b16 %v181, %v180
    %v200 = vpack.c.b16 %v183, %v182
    %v201 = vpack.c.b16 %v185, %v184
    %v202 = vpack.c.b16 %v187, %v186
    %v203 = vpack.c.b16 %v189, %v188
    %v204 = vpack.c.b16 %v191, %v190
    %v205 = vpack.c.b16 %v193, %v192
    %v219 = vsel %vm68, %v112, 0
    %v222 = vsel %vm68, %v114, 0
    %224 = vmatprep.subr.bf16.mxu0 0
    %225 = vmatpush1.bf16.msra.mxu0 %v201
    %226 = vmatprep.subr.bf16.mxu0 0
    %227 = vmatpush1.bf16.msra.mxu0 %v200
    %228 = vmatprep.subr.bf16.mxu0 0
    %229 = vmatpush1.bf16.msra.mxu0 %v199
    %230 = vmatprep.subr.bf16.mxu0 0
    %231 = vmatpush1.bf16.msra.mxu0 %v198
    %232 = vmatprep.subr.bf16.mxu0 0
    %233 = vmatpush1.bf16.msra.mxu0 %v197
    %234 = vmatprep.subr.bf16.mxu0 0
    %235 = vmatpush1.bf16.msra.mxu0 %v196
    %236 = vmatprep.subr.bf16.mxu0 0
    %237 = vmatpush1.bf16.msra.mxu0 %v195
    %238 = vmatprep.subr.bf16.mxu0 0
    %239 = vmatpush1.bf16.msra.mxu0 %v194
    %240 = vmatprep.subr.bf16.mxu0 0
    %241 = vmatpush2.bf16.msra.mxu0 0
    %242 = vmatprep.subr.bf16.mxu0 0
    %243 = vmatpush2.bf16.msra.mxu0 0
    %244 = vmatprep.subr.bf16.mxu0 0
    %245 = vmatpush2.bf16.msra.mxu0 0
    %246 = vmatprep.subr.bf16.mxu0 0
    %247 = vmatpush2.bf16.msra.mxu0 0
    %248 = vmatprep.subr.bf16.mxu0 0
    %249 = vmatpush2.bf16.msra.mxu0 %v205
    %250 = vmatprep.subr.bf16.mxu0 0
    %251 = vmatpush2.bf16.msra.mxu0 %v204
    %252 = vmatprep.subr.bf16.mxu0 0
    %253 = vmatpush2.bf16.msra.mxu0 %v203
    %254 = vmatprep.subr.bf16.mxu0 0
    %255 = vmatpush2.bf16.msra.mxu0 %v202
    %256 = vmatprep.mubr.bf16.mxu0 %v219
    %257 = vmatmul.mubr.bf16.gmra.mxu0 %v111
    %v258 = vpop.f32.mrf.mxu0
    %v259 = vadd.f32 %v144, %v258
    %v260 = vpop.f32.mrf.mxu0
    %v261 = vpop.f32.mrf.mxu0
    %v262 = vadd.f32 %v144, %v261
    %v263 = vpop.f32.mrf.mxu0
    %264 = vmatprep.mubr.bf16.mxu0 %v222
    %265 = vmatmul.mubr.bf16.gmra.mxu0 %v113
    %v266 = vpop.f32.mrf.mxu0
    %v267 = vadd.f32 %v144, %v266
    %v268 = vpop.f32.mrf.mxu0
    %v269 = vpop.f32.mrf.mxu0
    %v270 = vadd.f32 %v144, %v269
    %v271 = vpop.f32.mrf.mxu0
    %272 = vdwg.mxu0
    %v273 = vmax.f32 %v259, 0.0
    %v274 = vmax.f32 %v262, 0.0
    %v275 = vmax.f32 %v267, 0.0
    %v276 = vmax.f32 %v270, 0.0
    %277 = vst [vmem:[#allocation3] sm:$0x1] 0.0
    %278 = vst [vmem:[#allocation3 + $0x11] sm:$0x1] 0.0
    %279 = vst [vmem:[#allocation3 + $0x1] sm:$0xff] %v273
    %280 = vst [vmem:[#allocation3 + $0x9] sm:$0xff] %v274
    %s281 = scalar_lea.vmem [#allocation3], 24
    %282 = vst [vmem:[%s281] sm:$0x1] 0.0
    %283 = vst [vmem:[%s281 + $0x11] sm:$0x1] 0.0
    %284 = vst [vmem:[%s281 + $0x1] sm:$0xff] %v275
    %285 = vst [vmem:[%s281 + $0x9] sm:$0xff] %v276
    %v286 = vld [vmem:[#allocation3] sm:$0xff]
    %v287 = vld [vmem:[#allocation3 + $0x8] sm:$0xff]
    %v288 = vld [vmem:[#allocation3 + $0x1] sm:$0xff]
    %v289 = vld [vmem:[#allocation3 + $0x9] sm:$0xff]
    %v290 = vld [vmem:[#allocation3 + $0x2] sm:$0xff]
    %v291 = vld [vmem:[#allocation3 + $0xa] sm:$0xff]
    %v292 = vld [vmem:[%s281] sm:$0xff]
    %v293 = vld [vmem:[%s281 + $0x8] sm:$0xff]
    %v294 = vld [vmem:[%s281 + $0x1] sm:$0xff]
    %v295 = vld [vmem:[%s281 + $0x9] sm:$0xff]
    %v296 = vld [vmem:[%s281 + $0x2] sm:$0xff]
    %v297 = vld [vmem:[%s281 + $0xa] sm:$0xff]
    %v298 = vpack.c.bf16 %v287, %v286
    %v299 = vpack.c.bf16 %v289, %v288
    %v300 = vpack.c.bf16 %v291, %v290
    %v301 = vpack.c.bf16 %v293, %v292
    %v302 = vpack.c.bf16 %v295, %v294
    %v303 = vpack.c.bf16 %v297, %v296
    %v304 = vld [vmem:[#allocation9] sm:$0xf]
    %v305 = vld [vmem:[#allocation9 + $0x4] sm:$0xf]
    %v306 = vld [vmem:[#allocation9 + $0x8] sm:$0xf]
    %v307 = vld [vmem:[#allocation9 + $0xc] sm:$0xf]
    %v308 = vld [vmem:[#allocation9 + $0x10] sm:$0xf]
    %v309 = vld [vmem:[#allocation9 + $0x14] sm:$0xf]
    %v310 = vld [vmem:[#allocation9 + $0x18] sm:$0xf]
    %v311 = vld [vmem:[#allocation9 + $0x1c] sm:$0xf]
    %v312 = vld [vmem:[#allocation9 + $0x20] sm:$0xf]
    %v313 = vld [vmem:[#allocation9 + $0x24] sm:$0xf]
    %v314 = vld [vmem:[#allocation9 + $0x28] sm:$0xf]
    %v315 = vld [vmem:[#allocation9 + $0x2c] sm:$0xf]
    %v316 = vld [vmem:[#allocation9 + $0x30] sm:$0xf]
    %v317 = vld [vmem:[#allocation9 + $0x34] sm:$0xf]
    %v318 = vld [vmem:[#allocation9 + $0x38] sm:$0xf]
    %v319 = vld [vmem:[#allocation9 + $0x3c] sm:$0xf]
    %v320 = vld [vmem:[#allocation9 + $0x40] sm:$0xf]
    %v321 = vld [vmem:[#allocation9 + $0x44] sm:$0xf]
    %v322 = vld [vmem:[#allocation9 + $0x48] sm:$0xf]
    %v323 = vld [vmem:[#allocation9 + $0x4c] sm:$0xf]
    %v324 = vld [vmem:[#allocation9 + $0x50] sm:$0xf]
    %v325 = vld [vmem:[#allocation9 + $0x54] sm:$0xf]
    %v326 = vld [vmem:[#allocation9 + $0x58] sm:$0xf]
    %v327 = vld [vmem:[#allocation9 + $0x5c] sm:$0xf]
    %v328 = vld [vmem:[#allocation9 + $0x60] sm:$0xf]
    %v329 = vld [vmem:[#allocation9 + $0x64] sm:$0xf]
    %v330 = vld [vmem:[#allocation9 + $0x68] sm:$0xf]
    %v331 = vld [vmem:[#allocation9 + $0x6c] sm:$0xf]
    %v332 = vld [vmem:[#allocation9 + $0x70] sm:$0xf]
    %v333 = vld [vmem:[#allocation9 + $0x74] sm:$0xf]
    %v334 = vld [vmem:[#allocation9 + $0x78] sm:$0xf]
    %v335 = vld [vmem:[#allocation9 + $0x7c] sm:$0xf]
    %v336 = vld [vmem:[#allocation9 + $0x80] sm:$0xf]
    %v337 = vld [vmem:[#allocation9 + $0x84] sm:$0xf]
    %v338 = vld [vmem:[#allocation9 + $0x88] sm:$0xf]
    %v339 = vld [vmem:[#allocation9 + $0x8c] sm:$0xf]
    %v340 = vld [vmem:[#allocation9 + $0x90] sm:$0xf]
    %v341 = vld [vmem:[#allocation9 + $0x94] sm:$0xf]
    %v342 = vld [vmem:[#allocation9 + $0x98] sm:$0xf]
    %v343 = vld [vmem:[#allocation9 + $0x9c] sm:$0xf]
    %v344 = vld [vmem:[#allocation9 + $0xa0] sm:$0xf]
    %v345 = vld [vmem:[#allocation9 + $0xa4] sm:$0xf]
    %v346 = vld [vmem:[#allocation9 + $0xa8] sm:$0xf]
    %v347 = vld [vmem:[#allocation9 + $0xac] sm:$0xf]
    %v348 = vld [vmem:[#allocation9 + $0xb0] sm:$0xf]
    %v349 = vld [vmem:[#allocation9 + $0xb4] sm:$0xf]
    %v350 = vld [vmem:[#allocation9 + $0xb8] sm:$0xf]
    %v351 = vld [vmem:[#allocation9 + $0xbc] sm:$0xf]
    %v352 = vld [vmem:[%s4] sm:$0x1]
    %v354 = vlaneseq
    %v355 = vshrl.u32 %v354, 7
    %v356 = vsub.s32 0, %v355
    %v357 = vrot.slane %v352, %v356
    %v407 = vunpack.c.l.b16 %v304
    %v408 = vunpack.c.l.b16 %v305
    %v409 = vunpack.c.l.b16 %v306
    %v410 = vunpack.c.l.b16 %v307
    %v411 = vunpack.c.l.b16 %v308
    %v412 = vunpack.c.l.b16 %v309
    %v413 = vunpack.c.l.b16 %v310
    %v414 = vunpack.c.l.b16 %v311
    %v415 = vunpack.c.l.b16 %v312
    %v416 = vunpack.c.l.b16 %v313
    %v417 = vunpack.c.l.b16 %v314
    %v418 = vunpack.c.l.b16 %v315
    %v419 = vunpack.c.l.b16 %v316
    %v420 = vunpack.c.l.b16 %v317
    %v421 = vunpack.c.l.b16 %v318
    %v422 = vunpack.c.l.b16 %v319
    %v423 = vunpack.c.l.b16 %v320
    %v424 = vunpack.c.l.b16 %v321
    %v425 = vunpack.c.l.b16 %v322
    %v426 = vunpack.c.l.b16 %v323
    %v427 = vunpack.c.l.b16 %v324
    %v428 = vunpack.c.l.b16 %v325
    %v429 = vunpack.c.l.b16 %v326
    %v430 = vunpack.c.l.b16 %v327
    %v431 = vunpack.c.l.b16 %v328
    %v432 = vunpack.c.l.b16 %v329
    %v433 = vunpack.c.l.b16 %v330
    %v434 = vunpack.c.l.b16 %v331
    %v435 = vunpack.c.l.b16 %v332
    %v436 = vunpack.c.l.b16 %v333
    %v437 = vunpack.c.l.b16 %v334
    %v438 = vunpack.c.l.b16 %v335
    %v439 = vunpack.c.l.b16 %v336
    %v440 = vunpack.c.l.b16 %v337
    %v441 = vunpack.c.l.b16 %v338
    %v442 = vunpack.c.l.b16 %v339
    %v443 = vunpack.c.l.b16 %v340
    %v444 = vunpack.c.l.b16 %v341
    %v445 = vunpack.c.l.b16 %v342
    %v446 = vunpack.c.l.b16 %v343
    %v447 = vunpack.c.l.b16 %v344
    %v448 = vunpack.c.l.b16 %v345
    %v449 = vunpack.c.l.b16 %v346
    %v450 = vunpack.c.l.b16 %v347
    %v451 = vunpack.c.l.b16 %v348
    %v452 = vunpack.c.l.b16 %v349
    %v453 = vunpack.c.l.b16 %v350
    %v454 = vunpack.c.l.b16 %v351
    %v455 = vpack.c.b16 %v408, %v407
    %v456 = vpack.c.b16 %v410, %v409
    %v457 = vpack.c.b16 %v412, %v411
    %v458 = vpack.c.b16 %v414, %v413
    %v459 = vpack.c.b16 %v416, %v415
    %v460 = vpack.c.b16 %v418, %v417
    %v461 = vpack.c.b16 %v420, %v419
    %v462 = vpack.c.b16 %v422, %v421
    %v463 = vpack.c.b16 %v424, %v423
    %v464 = vpack.c.b16 %v426, %v425
    %v465 = vpack.c.b16 %v428, %v427
    %v466 = vpack.c.b16 %v430, %v429
    %v467 = vpack.c.b16 %v432, %v431
    %v468 = vpack.c.b16 %v434, %v433
    %v469 = vpack.c.b16 %v436, %v435
    %v470 = vpack.c.b16 %v438, %v437
    %v471 = vpack.c.b16 %v440, %v439
    %v472 = vpack.c.b16 %v442, %v441
    %v473 = vpack.c.b16 %v444, %v443
    %v474 = vpack.c.b16 %v446, %v445
    %v475 = vpack.c.b16 %v448, %v447
    %v476 = vpack.c.b16 %v450, %v449
    %v477 = vpack.c.b16 %v452, %v451
    %v478 = vpack.c.b16 %v454, %v453
    %503 = vmatprep.subr.bf16.mxu0 0
    %504 = vmatpush1.bf16.msra.mxu0 %v462
    %505 = vmatprep.subr.bf16.mxu0 0
    %506 = vmatpush1.bf16.msra.mxu0 %v461
    %507 = vmatprep.subr.bf16.mxu0 0
    %508 = vmatpush1.bf16.msra.mxu0 %v460
    %509 = vmatprep.subr.bf16.mxu0 0
    %510 = vmatpush1.bf16.msra.mxu0 %v459
    %511 = vmatprep.subr.bf16.mxu0 0
    %512 = vmatpush1.bf16.msra.mxu0 %v458
    %513 = vmatprep.subr.bf16.mxu0 0
    %514 = vmatpush1.bf16.msra.mxu0 %v457
    %515 = vmatprep.subr.bf16.mxu0 0
    %516 = vmatpush1.bf16.msra.mxu0 %v456
    %517 = vmatprep.subr.bf16.mxu0 0
    %518 = vmatpush1.bf16.msra.mxu0 %v455
    %519 = vmatprep.subr.bf16.mxu0 0
    %520 = vmatpush2.bf16.msra.mxu0 %v470
    %521 = vmatprep.subr.bf16.mxu0 0
    %522 = vmatpush2.bf16.msra.mxu0 %v469
    %523 = vmatprep.subr.bf16.mxu0 0
    %524 = vmatpush2.bf16.msra.mxu0 %v468
    %525 = vmatprep.subr.bf16.mxu0 0
    %526 = vmatpush2.bf16.msra.mxu0 %v467
    %527 = vmatprep.subr.bf16.mxu0 0
    %528 = vmatpush2.bf16.msra.mxu0 %v466
    %529 = vmatprep.subr.bf16.mxu0 0
    %530 = vmatpush2.bf16.msra.mxu0 %v465
    %531 = vmatprep.subr.bf16.mxu0 0
    %532 = vmatpush2.bf16.msra.mxu0 %v464
    %533 = vmatprep.subr.bf16.mxu0 0
    %534 = vmatpush2.bf16.msra.mxu0 %v463
    %535 = vmatprep.mubr.bf16.mxu0 %v299
    %536 = vmatmul.mubr.bf16.gmra.mxu0 %v298
    %v537 = vpop.f32.mrf.mxu0
    %v538 = vadd.f32 %v357, %v537
    %v539 = vpop.f32.mrf.mxu0
    %v540 = vpop.f32.mrf.mxu0
    %v541 = vadd.f32 %v357, %v540
    %v542 = vpop.f32.mrf.mxu0
    %543 = vmatprep.mubr.bf16.mxu0 %v302
    %544 = vmatmul.mubr.bf16.gmra.mxu0 %v301
    %v545 = vpop.f32.mrf.mxu0
    %v546 = vadd.f32 %v357, %v545
    %v547 = vpop.f32.mrf.mxu0
    %v548 = vpop.f32.mrf.mxu0
    %v549 = vadd.f32 %v357, %v548
    %v550 = vpop.f32.mrf.mxu0
    %551 = vdwg.mxu0
    %552 = vmatprep.subr.bf16.mxu0 0
    %553 = vmatpush1.bf16.msra.mxu0 %v478
    %554 = vmatprep.subr.bf16.mxu0 0
    %555 = vmatpush1.bf16.msra.mxu0 %v477
    %556 = vmatprep.subr.bf16.mxu0 0
    %557 = vmatpush1.bf16.msra.mxu0 %v476
    %558 = vmatprep.subr.bf16.mxu0 0
    %559 = vmatpush1.bf16.msra.mxu0 %v475
    %560 = vmatprep.subr.bf16.mxu0 0
    %561 = vmatpush1.bf16.msra.mxu0 %v474
    %562 = vmatprep.subr.bf16.mxu0 0
    %563 = vmatpush1.bf16.msra.mxu0 %v473
    %564 = vmatprep.subr.bf16.mxu0 0
    %565 = vmatpush1.bf16.msra.mxu0 %v472
    %566 = vmatprep.subr.bf16.mxu0 0
    %567 = vmatpush1.bf16.msra.mxu0 %v471
    %568 = vmatprep.subr.bf16.mxu0 0
    %569 = vmatpush2.bf16.msra.mxu0 0
    %570 = vmatprep.subr.bf16.mxu0 0
    %571 = vmatpush2.bf16.msra.mxu0 0
    %572 = vmatprep.subr.bf16.mxu0 0
    %573 = vmatpush2.bf16.msra.mxu0 0
    %574 = vmatprep.subr.bf16.mxu0 0
    %575 = vmatpush2.bf16.msra.mxu0 0
    %576 = vmatprep.subr.bf16.mxu0 0
    %577 = vmatpush2.bf16.msra.mxu0 0
    %578 = vmatprep.subr.bf16.mxu0 0
    %579 = vmatpush2.bf16.msra.mxu0 0
    %580 = vmatprep.subr.bf16.mxu0 0
    %581 = vmatpush2.bf16.msra.mxu0 0
    %582 = vmatprep.subr.bf16.mxu0 0
    %583 = vmatpush2.bf16.msra.mxu0 0
    %584 = vmatprep.mubr.bf16.mxu0 0
    %585 = vmatmul.mubr.bf16.gmra.mxu0 %v300
    %v586 = vpop.f32.mrf.mxu0
    %v587 = vadd.f32 %v538, %v586
    %v588 = vpop.f32.mrf.mxu0
    %v589 = vpop.f32.mrf.mxu0
    %v590 = vadd.f32 %v541, %v589
    %v591 = vpop.f32.mrf.mxu0
    %592 = vmatprep.mubr.bf16.mxu0 0
    %593 = vmatmul.mubr.bf16.gmra.mxu0 %v303
    %v594 = vpop.f32.mrf.mxu0
    %v595 = vadd.f32 %v546, %v594
    %v596 = vpop.f32.mrf.mxu0
    %v597 = vpop.f32.mrf.mxu0
    %v598 = vadd.f32 %v549, %v597
    %v599 = vpop.f32.mrf.mxu0
    %600 = vdwg.mxu0
    %v601 = vmax.f32 %v587, 0.0
    %v602 = vmax.f32 %v590, 0.0
    %v603 = vmax.f32 %v595, 0.0
    %v604 = vmax.f32 %v598, 0.0
    %605 = vst [vmem:[#allocation10] sm:$0xff] %v601
    %606 = vst [vmem:[#allocation10 + $0x8] sm:$0xff] %v602
    %607 = vst [vmem:[#allocation10 + $0x10] sm:$0xff] %v603
    %608 = vst [vmem:[#allocation10 + $0x18] sm:$0xff] %v604
    // Predicated region
    $region34: #{tpu_custom_call.1} parent=1 // pred_check
      _
    $region35: #{tpu_custom_call.1} parent=1 // pred_check_branch
      %610 = sbr.rel (0) target = $region37
    $region36: #{tpu_custom_call.1} parent=1 // pred_region
      %s612 = ssub.s32 512, 512
      %613 = vsyncadd [#allocation6], %s612
      %s614 = sshll.u32 [#allocation10], 4
      %s615 = int_to_ptr.vmem [resolvable:$true] %s614
      %620 = dma.vmem_to_hbm [thread:$0]  %s615, 512, %s5, [#allocation6], 128, 128, 8
    $region37: #{tpu_custom_call.1} parent=1 // pred_fallthru
      _
    // Predicated region
    $region38: #{tpu_custom_call.1} parent=1 // pred_check
      _
    $region39: #{tpu_custom_call.1} parent=1 // pred_check_branch
      %622 = sbr.rel (0) target = $region41
    $region40: #{tpu_custom_call.1} parent=1 // pred_region
      %623 = dma.done [#allocation6], 512
    $region41: #{tpu_custom_call.1} parent=1 // pred_fallthru
      _
    %624 = vsyncpa [#allocation5], 1
    %625 = vsyncpa [#allocation8], 1
    %626 = vsyncpa [#allocation6], 1

</llo_original>
